<compile_context>
chip_gen: v6e
topology: v6e:2x2x1
jax: 0.10.0
libtpu: 0.0.40
codegen_flags: <defaults>
</compile_context>

<pallas_src>
import jax
import jax.numpy as jnp
from jax import lax
from jax.experimental import pallas as pl
from jax.experimental.pallas import tpu as pltpu

HIDDEN = 32
INPUT = 1
OUTPUT = 1


def _lstm_fc_kernel(x_ref, wih_ref, bias_ref, whh_ref, wfc_ref, bfc_ref, out_ref):
    # x_ref:    (Bp, T)   raw inputs (input_size == 1, squeezed), batch-major
    # wih_ref:  (1, 4H)   = weight_ih_l0[:, 0] as a row
    # bias_ref: (1, 4H)   = b_ih + b_hh
    # whh_ref:  (H, 4H)   = weight_hh_l0.T
    # wfc_ref:  (H, O)    = fc.weight.T
    # bfc_ref:  (1, O)    = fc.bias
    # out_ref:  (Bp, O)
    Bp, T = x_ref.shape
    H = whh_ref.shape[0]

    x = x_ref[...]                                   # (Bp, T)   one vreg
    whh = whh_ref[...]                               # (H, 4H)

    # Hoisted broadcasts (JAX does not CSE broadcast_in_dim inside the loop).
    wih_b = jnp.broadcast_to(wih_ref[...], (Bp, 4 * H))
    bias_b = jnp.broadcast_to(bias_ref[...], (Bp, 4 * H))

    # Column scale so ONE full-width tanh gives every gate:
    #   sigmoid(v) = 0.5 * (1 + tanh(0.5 * v))  for the i, f, o columns,
    #   tanh(v)                                 for the g columns.
    col = lax.broadcasted_iota(jnp.int32, (1, 4 * H), 1)
    is_g = (col >= 2 * H) & (col < 3 * H)
    scale_b = jnp.broadcast_to(
        jnp.where(is_g, 1.0, 0.5).astype(jnp.float32), (Bp, 4 * H))

    h = jnp.zeros((Bp, H), jnp.float32)
    c = jnp.zeros((Bp, H), jnp.float32)

    # T is static and small -> static Python loop = fully unrolled straight-line
    # code; h / c stay in vregs across steps.
    for t in range(T):
        x_t = x[:, t:t + 1]                          # (Bp, 1) -> lane broadcast
        gates = (x_t * wih_b + bias_b
                 + jnp.dot(h, whh, preferred_element_type=jnp.float32))
        z = jnp.tanh(gates * scale_b)                # single (Bp, 4H) transcendental
        s = 0.5 * z + 0.5                            # sigmoid values for i, f, o
        i_g = s[:, 0 * H:1 * H]
        f_g = s[:, 1 * H:2 * H]
        g_g = z[:, 2 * H:3 * H]
        o_g = s[:, 3 * H:4 * H]
        c = f_g * c + i_g * g_g
        h = o_g * jnp.tanh(c)

    # fc on the last timestep hidden state.
    out_ref[...] = (jnp.dot(h, wfc_ref[...], preferred_element_type=jnp.float32)
                    + bfc_ref[...])


@jax.jit
def simple_lstm_forward(x, w_ih, w_hh, b_ih, b_hh, w_fc, b_fc):
    """x: (B, T, I) float32 — matches PyTorch batch_first input (I must be 1)."""
    B, T, I = x.shape
    H = w_hh.shape[1]
    O = w_fc.shape[0]
    assert I == 1, "kernel is specialized to the module spec input_size == 1"
    Bp = ((B + 7) // 8) * 8                            # pad batch to 8 sublanes

    x2 = x.astype(jnp.float32).reshape(B, T)           # squeeze input dim
    if Bp != B:
        x2 = jnp.pad(x2, ((0, Bp - B), (0, 0)))

    wih_row = w_ih.astype(jnp.float32).reshape(1, 4 * H)          # (1, 4H)
    bias = (b_ih + b_hh).astype(jnp.float32).reshape(1, 4 * H)    # (1, 4H)
    whh_t = w_hh.T.astype(jnp.float32)                            # (H, 4H)
    wfc_t = w_fc.T.astype(jnp.float32)                            # (H, O)
    bfc = b_fc.astype(jnp.float32).reshape(1, O)                  # (1, O)

    # NOTE: single grid point — at this size the whole problem is one serial
    # recurrence that fits trivially in VMEM.  If batch grows, add a leading
    # "parallel" batch grid axis so multi-TC chips (v7x) shard independent
    # sequences across cores.
    out = pl.pallas_call(
        _lstm_fc_kernel,
        out_shape=jax.ShapeDtypeStruct((Bp, O), jnp.float32),
        in_specs=[pl.BlockSpec(memory_space=pltpu.MemorySpace.VMEM)] * 6,
        out_specs=pl.BlockSpec(memory_space=pltpu.MemorySpace.VMEM),
    )(x2, wih_row, bias, whh_t, wfc_t, bfc)
    return out[:B]


def _reference_forward(x, w_ih, w_hh, b_ih, b_hh, w_fc, b_fc):
    """Pure-JAX reference matching torch.nn.LSTM semantics (gate order i,f,g,o)."""
    B, T, I = x.shape
    H = w_hh.shape[1]
    h = jnp.zeros((B, H), jnp.float32)
    c = jnp.zeros((B, H), jnp.float32)
    for t in range(T):
        gates = x[:, t, :] @ w_ih.T + h @ w_hh.T + b_ih + b_hh
        i_g = jax.nn.sigmoid(gates[:, 0 * H:1 * H])
        f_g = jax.nn.sigmoid(gates[:, 1 * H:2 * H])
        g_g = jnp.tanh(gates[:, 2 * H:3 * H])
        o_g = jax.nn.sigmoid(gates[:, 3 * H:4 * H])
        c = f_g * c + i_g * g_g
        h = o_g * jnp.tanh(c)
    return h @ w_fc.T + b_fc


if __name__ == "__main__":
    B, T = 4, 8
    H, I, O = HIDDEN, INPUT, OUTPUT

    key = jax.random.PRNGKey(0)
    kx, k1, k2, k3, k4, k5, k6 = jax.random.split(key, 7)

    # PyTorch default init: uniform(-1/sqrt(H), 1/sqrt(H))
    bound = 1.0 / jnp.sqrt(jnp.float32(H))
    w_ih = jax.random.uniform(k1, (4 * H, I), jnp.float32, -bound, bound)
    w_hh = jax.random.uniform(k2, (4 * H, H), jnp.float32, -bound, bound)
    b_ih = jax.random.uniform(k3, (4 * H,), jnp.float32, -bound, bound)
    b_hh = jax.random.uniform(k4, (4 * H,), jnp.float32, -bound, bound)
    w_fc = jax.random.uniform(k5, (O, H), jnp.float32, -bound, bound)
    b_fc = jax.random.uniform(k6, (O,), jnp.float32, -bound, bound)

    x = jax.random.normal(kx, (B, T, I), jnp.float32)

    out = simple_lstm_forward(x, w_ih, w_hh, b_ih, b_hh, w_fc, b_fc)
    out = jax.block_until_ready(out)

    ref = _reference_forward(x, w_ih, w_hh, b_ih, b_hh, w_fc, b_fc)
    assert out.shape == (B, O)
    assert jnp.allclose(out, ref, atol=1e-5, rtol=1e-5), (out, ref)

    print("KERNEL_OK")
</pallas_src>

<mosaic_0001>
module attributes {stable_mosaic.version = 11 : i64} {
  func.func @_lstm_fc_kernel(%arg0: memref<8x8xf32, #tpu.memory_space<vmem>>, %arg1: memref<1x128xf32, #tpu.memory_space<vmem>>, %arg2: memref<1x128xf32, #tpu.memory_space<vmem>>, %arg3: memref<32x128xf32, #tpu.memory_space<vmem>>, %arg4: memref<32x1xf32, #tpu.memory_space<vmem>>, %arg5: memref<1x1xf32, #tpu.memory_space<vmem>>, %arg6: memref<8x1xf32, #tpu.memory_space<vmem>>) attributes {dimension_semantics = [], scalar_prefetch = 0 : i64, scratch_operands = 0 : i64, tpu.core_type = #tpu.core_type<tc>} {
    %c0 = arith.constant 0 : index
    %c0_0 = arith.constant 0 : index
    %0 = vector.load %arg0[%c0, %c0_0] : memref<8x8xf32, #tpu.memory_space<vmem>>, vector<8x8xf32>
    %c0_1 = arith.constant 0 : index
    %c0_2 = arith.constant 0 : index
    %1 = vector.load %arg3[%c0_1, %c0_2] : memref<32x128xf32, #tpu.memory_space<vmem>>, vector<32x128xf32>
    %c0_3 = arith.constant 0 : index
    %c0_4 = arith.constant 0 : index
    %2 = vector.load %arg1[%c0_3, %c0_4] : memref<1x128xf32, #tpu.memory_space<vmem>>, vector<1x128xf32>
    %3 = vector.shape_cast %2 : vector<1x128xf32> to vector<1x128xf32>
    %4 = vector.broadcast %3 : vector<1x128xf32> to vector<8x128xf32>
    %c0_5 = arith.constant 0 : index
    %c0_6 = arith.constant 0 : index
    %5 = vector.load %arg2[%c0_5, %c0_6] : memref<1x128xf32, #tpu.memory_space<vmem>>, vector<1x128xf32>
    %6 = vector.shape_cast %5 : vector<1x128xf32> to vector<1x128xf32>
    %7 = vector.broadcast %6 : vector<1x128xf32> to vector<8x128xf32>
    %8 = tpu.iota {dimensions = array<i32: 1>} : vector<1x128xi32>
    %c64_i32 = arith.constant 64 : i32
    %9 = vector.broadcast %c64_i32 : i32 to vector<1x128xi32>
    %10 = arith.cmpi sge, %8, %9 : vector<1x128xi32>
    %c96_i32 = arith.constant 96 : i32
    %11 = vector.broadcast %c96_i32 : i32 to vector<1x128xi32>
    %12 = arith.cmpi slt, %8, %11 : vector<1x128xi32>
    %13 = arith.andi %10, %12 : vector<1x128xi1>
    %cst = arith.constant 1.000000e+00 : f32
    %cst_7 = arith.constant 5.000000e-01 : f32
    %14 = vector.broadcast %cst : f32 to vector<1x128xf32>
    %15 = vector.broadcast %cst_7 : f32 to vector<1x128xf32>
    %16 = arith.select %13, %14, %15 : vector<1x128xi1>, vector<1x128xf32>
    %17 = vector.shape_cast %16 : vector<1x128xf32> to vector<1x128xf32>
    %18 = vector.broadcast %17 : vector<1x128xf32> to vector<8x128xf32>
    %cst_8 = arith.constant 0.000000e+00 : f32
    %19 = vector.broadcast %cst_8 : f32 to vector<8x32xf32>
    %cst_9 = arith.constant 0.000000e+00 : f32
    %20 = vector.broadcast %cst_9 : f32 to vector<8x32xf32>
    %21 = vector.extract_strided_slice %0 {offsets = [0, 0], sizes = [8, 1], strides = [1, 1]} : vector<8x8xf32> to vector<8x1xf32>
    %22 = vector.broadcast %21 : vector<8x1xf32> to vector<8x128xf32>
    %23 = arith.mulf %22, %4 : vector<8x128xf32>
    %24 = arith.addf %23, %7 : vector<8x128xf32>
    %cst_10 = arith.constant dense<0.000000e+00> : vector<8x128xf32>
    %25 = tpu.matmul %19, %1, %cst_10 {dimension_numbers = #tpu.dot_dimension_numbers<[1], [0], [0], [1], [0, 0, 1, 1], [], []>} : vector<8x32xf32>, vector<32x128xf32>, vector<8x128xf32> -> vector<8x128xf32>
    %26 = arith.addf %24, %25 : vector<8x128xf32>
    %27 = arith.mulf %26, %18 : vector<8x128xf32>
    %28 = math.tanh %27 : vector<8x128xf32>
    %cst_11 = arith.constant 5.000000e-01 : f32
    %29 = vector.broadcast %cst_11 : f32 to vector<8x128xf32>
    %30 = arith.mulf %29, %28 : vector<8x128xf32>
    %cst_12 = arith.constant 5.000000e-01 : f32
    %31 = vector.broadcast %cst_12 : f32 to vector<8x128xf32>
    %32 = arith.addf %30, %31 : vector<8x128xf32>
    %33 = vector.extract_strided_slice %32 {offsets = [0, 0], sizes = [8, 32], strides = [1, 1]} : vector<8x128xf32> to vector<8x32xf32>
    %34 = vector.extract_strided_slice %32 {offsets = [0, 32], sizes = [8, 32], strides = [1, 1]} : vector<8x128xf32> to vector<8x32xf32>
    %35 = vector.extract_strided_slice %28 {offsets = [0, 64], sizes = [8, 32], strides = [1, 1]} : vector<8x128xf32> to vector<8x32xf32>
    %36 = vector.extract_strided_slice %32 {offsets = [0, 96], sizes = [8, 32], strides = [1, 1]} : vector<8x128xf32> to vector<8x32xf32>
    %37 = arith.mulf %34, %20 : vector<8x32xf32>
    %38 = arith.mulf %33, %35 : vector<8x32xf32>
    %39 = arith.addf %37, %38 : vector<8x32xf32>
    %40 = math.tanh %39 : vector<8x32xf32>
    %41 = arith.mulf %36, %40 : vector<8x32xf32>
    %42 = vector.extract_strided_slice %0 {offsets = [0, 1], sizes = [8, 1], strides = [1, 1]} : vector<8x8xf32> to vector<8x1xf32>
    %43 = vector.broadcast %42 : vector<8x1xf32> to vector<8x128xf32>
    %44 = arith.mulf %43, %4 : vector<8x128xf32>
    %45 = arith.addf %44, %7 : vector<8x128xf32>
    %cst_13 = arith.constant dense<0.000000e+00> : vector<8x128xf32>
    %46 = tpu.matmul %41, %1, %cst_13 {dimension_numbers = #tpu.dot_dimension_numbers<[1], [0], [0], [1], [0, 0, 1, 1], [], []>} : vector<8x32xf32>, vector<32x128xf32>, vector<8x128xf32> -> vector<8x128xf32>
    %47 = arith.addf %45, %46 : vector<8x128xf32>
    %48 = arith.mulf %47, %18 : vector<8x128xf32>
    %49 = math.tanh %48 : vector<8x128xf32>
    %cst_14 = arith.constant 5.000000e-01 : f32
    %50 = vector.broadcast %cst_14 : f32 to vector<8x128xf32>
    %51 = arith.mulf %50, %49 : vector<8x128xf32>
    %cst_15 = arith.constant 5.000000e-01 : f32
    %52 = vector.broadcast %cst_15 : f32 to vector<8x128xf32>
    %53 = arith.addf %51, %52 : vector<8x128xf32>
    %54 = vector.extract_strided_slice %53 {offsets = [0, 0], sizes = [8, 32], strides = [1, 1]} : vector<8x128xf32> to vector<8x32xf32>
    %55 = vector.extract_strided_slice %53 {offsets = [0, 32], sizes = [8, 32], strides = [1, 1]} : vector<8x128xf32> to vector<8x32xf32>
    %56 = vector.extract_strided_slice %49 {offsets = [0, 64], sizes = [8, 32], strides = [1, 1]} : vector<8x128xf32> to vector<8x32xf32>
    %57 = vector.extract_strided_slice %53 {offsets = [0, 96], sizes = [8, 32], strides = [1, 1]} : vector<8x128xf32> to vector<8x32xf32>
    %58 = arith.mulf %55, %39 : vector<8x32xf32>
    %59 = arith.mulf %54, %56 : vector<8x32xf32>
    %60 = arith.addf %58, %59 : vector<8x32xf32>
    %61 = math.tanh %60 : vector<8x32xf32>
    %62 = arith.mulf %57, %61 : vector<8x32xf32>
    %63 = vector.extract_strided_slice %0 {offsets = [0, 2], sizes = [8, 1], strides = [1, 1]} : vector<8x8xf32> to vector<8x1xf32>
    %64 = vector.broadcast %63 : vector<8x1xf32> to vector<8x128xf32>
    %65 = arith.mulf %64, %4 : vector<8x128xf32>
    %66 = arith.addf %65, %7 : vector<8x128xf32>
    %cst_16 = arith.constant dense<0.000000e+00> : vector<8x128xf32>
    %67 = tpu.matmul %62, %1, %cst_16 {dimension_numbers = #tpu.dot_dimension_numbers<[1], [0], [0], [1], [0, 0, 1, 1], [], []>} : vector<8x32xf32>, vector<32x128xf32>, vector<8x128xf32> -> vector<8x128xf32>
    %68 = arith.addf %66, %67 : vector<8x128xf32>
    %69 = arith.mulf %68, %18 : vector<8x128xf32>
    %70 = math.tanh %69 : vector<8x128xf32>
    %cst_17 = arith.constant 5.000000e-01 : f32
    %71 = vector.broadcast %cst_17 : f32 to vector<8x128xf32>
    %72 = arith.mulf %71, %70 : vector<8x128xf32>
    %cst_18 = arith.constant 5.000000e-01 : f32
    %73 = vector.broadcast %cst_18 : f32 to vector<8x128xf32>
    %74 = arith.addf %72, %73 : vector<8x128xf32>
    %75 = vector.extract_strided_slice %74 {offsets = [0, 0], sizes = [8, 32], strides = [1, 1]} : vector<8x128xf32> to vector<8x32xf32>
    %76 = vector.extract_strided_slice %74 {offsets = [0, 32], sizes = [8, 32], strides = [1, 1]} : vector<8x128xf32> to vector<8x32xf32>
    %77 = vector.extract_strided_slice %70 {offsets = [0, 64], sizes = [8, 32], strides = [1, 1]} : vector<8x128xf32> to vector<8x32xf32>
    %78 = vector.extract_strided_slice %74 {offsets = [0, 96], sizes = [8, 32], strides = [1, 1]} : vector<8x128xf32> to vector<8x32xf32>
    %79 = arith.mulf %76, %60 : vector<8x32xf32>
    %80 = arith.mulf %75, %77 : vector<8x32xf32>
    %81 = arith.addf %79, %80 : vector<8x32xf32>
    %82 = math.tanh %81 : vector<8x32xf32>
    %83 = arith.mulf %78, %82 : vector<8x32xf32>
    %84 = vector.extract_strided_slice %0 {offsets = [0, 3], sizes = [8, 1], strides = [1, 1]} : vector<8x8xf32> to vector<8x1xf32>
    %85 = vector.broadcast %84 : vector<8x1xf32> to vector<8x128xf32>
    %86 = arith.mulf %85, %4 : vector<8x128xf32>
    %87 = arith.addf %86, %7 : vector<8x128xf32>
    %cst_19 = arith.constant dense<0.000000e+00> : vector<8x128xf32>
    %88 = tpu.matmul %83, %1, %cst_19 {dimension_numbers = #tpu.dot_dimension_numbers<[1], [0], [0], [1], [0, 0, 1, 1], [], []>} : vector<8x32xf32>, vector<32x128xf32>, vector<8x128xf32> -> vector<8x128xf32>
    %89 = arith.addf %87, %88 : vector<8x128xf32>
    %90 = arith.mulf %89, %18 : vector<8x128xf32>
    %91 = math.tanh %90 : vector<8x128xf32>
    %cst_20 = arith.constant 5.000000e-01 : f32
    %92 = vector.broadcast %cst_20 : f32 to vector<8x128xf32>
    %93 = arith.mulf %92, %91 : vector<8x128xf32>
    %cst_21 = arith.constant 5.000000e-01 : f32
    %94 = vector.broadcast %cst_21 : f32 to vector<8x128xf32>
    %95 = arith.addf %93, %94 : vector<8x128xf32>
    %96 = vector.extract_strided_slice %95 {offsets = [0, 0], sizes = [8, 32], strides = [1, 1]} : vector<8x128xf32> to vector<8x32xf32>
    %97 = vector.extract_strided_slice %95 {offsets = [0, 32], sizes = [8, 32], strides = [1, 1]} : vector<8x128xf32> to vector<8x32xf32>
    %98 = vector.extract_strided_slice %91 {offsets = [0, 64], sizes = [8, 32], strides = [1, 1]} : vector<8x128xf32> to vector<8x32xf32>
    %99 = vector.extract_strided_slice %95 {offsets = [0, 96], sizes = [8, 32], strides = [1, 1]} : vector<8x128xf32> to vector<8x32xf32>
    %100 = arith.mulf %97, %81 : vector<8x32xf32>
    %101 = arith.mulf %96, %98 : vector<8x32xf32>
    %102 = arith.addf %100, %101 : vector<8x32xf32>
    %103 = math.tanh %102 : vector<8x32xf32>
    %104 = arith.mulf %99, %103 : vector<8x32xf32>
    %105 = vector.extract_strided_slice %0 {offsets = [0, 4], sizes = [8, 1], strides = [1, 1]} : vector<8x8xf32> to vector<8x1xf32>
    %106 = vector.broadcast %105 : vector<8x1xf32> to vector<8x128xf32>
    %107 = arith.mulf %106, %4 : vector<8x128xf32>
    %108 = arith.addf %107, %7 : vector<8x128xf32>
    %cst_22 = arith.constant dense<0.000000e+00> : vector<8x128xf32>
    %109 = tpu.matmul %104, %1, %cst_22 {dimension_numbers = #tpu.dot_dimension_numbers<[1], [0], [0], [1], [0, 0, 1, 1], [], []>} : vector<8x32xf32>, vector<32x128xf32>, vector<8x128xf32> -> vector<8x128xf32>
    %110 = arith.addf %108, %109 : vector<8x128xf32>
    %111 = arith.mulf %110, %18 : vector<8x128xf32>
    %112 = math.tanh %111 : vector<8x128xf32>
    %cst_23 = arith.constant 5.000000e-01 : f32
    %113 = vector.broadcast %cst_23 : f32 to vector<8x128xf32>
    %114 = arith.mulf %113, %112 : vector<8x128xf32>
    %cst_24 = arith.constant 5.000000e-01 : f32
    %115 = vector.broadcast %cst_24 : f32 to vector<8x128xf32>
    %116 = arith.addf %114, %115 : vector<8x128xf32>
    %117 = vector.extract_strided_slice %116 {offsets = [0, 0], sizes = [8, 32], strides = [1, 1]} : vector<8x128xf32> to vector<8x32xf32>
    %118 = vector.extract_strided_slice %116 {offsets = [0, 32], sizes = [8, 32], strides = [1, 1]} : vector<8x128xf32> to vector<8x32xf32>
    %119 = vector.extract_strided_slice %112 {offsets = [0, 64], sizes = [8, 32], strides = [1, 1]} : vector<8x128xf32> to vector<8x32xf32>
    %120 = vector.extract_strided_slice %116 {offsets = [0, 96], sizes = [8, 32], strides = [1, 1]} : vector<8x128xf32> to vector<8x32xf32>
    %121 = arith.mulf %118, %102 : vector<8x32xf32>
    %122 = arith.mulf %117, %119 : vector<8x32xf32>
    %123 = arith.addf %121, %122 : vector<8x32xf32>
    %124 = math.tanh %123 : vector<8x32xf32>
    %125 = arith.mulf %120, %124 : vector<8x32xf32>
    %126 = vector.extract_strided_slice %0 {offsets = [0, 5], sizes = [8, 1], strides = [1, 1]} : vector<8x8xf32> to vector<8x1xf32>
    %127 = vector.broadcast %126 : vector<8x1xf32> to vector<8x128xf32>
    %128 = arith.mulf %127, %4 : vector<8x128xf32>
    %129 = arith.addf %128, %7 : vector<8x128xf32>
    %cst_25 = arith.constant dense<0.000000e+00> : vector<8x128xf32>
    %130 = tpu.matmul %125, %1, %cst_25 {dimension_numbers = #tpu.dot_dimension_numbers<[1], [0], [0], [1], [0, 0, 1, 1], [], []>} : vector<8x32xf32>, vector<32x128xf32>, vector<8x128xf32> -> vector<8x128xf32>
    %131 = arith.addf %129, %130 : vector<8x128xf32>
    %132 = arith.mulf %131, %18 : vector<8x128xf32>
    %133 = math.tanh %132 : vector<8x128xf32>
    %cst_26 = arith.constant 5.000000e-01 : f32
    %134 = vector.broadcast %cst_26 : f32 to vector<8x128xf32>
    %135 = arith.mulf %134, %133 : vector<8x128xf32>
    %cst_27 = arith.constant 5.000000e-01 : f32
    %136 = vector.broadcast %cst_27 : f32 to vector<8x128xf32>
    %137 = arith.addf %135, %136 : vector<8x128xf32>
    %138 = vector.extract_strided_slice %137 {offsets = [0, 0], sizes = [8, 32], strides = [1, 1]} : vector<8x128xf32> to vector<8x32xf32>
    %139 = vector.extract_strided_slice %137 {offsets = [0, 32], sizes = [8, 32], strides = [1, 1]} : vector<8x128xf32> to vector<8x32xf32>
    %140 = vector.extract_strided_slice %133 {offsets = [0, 64], sizes = [8, 32], strides = [1, 1]} : vector<8x128xf32> to vector<8x32xf32>
    %141 = vector.extract_strided_slice %137 {offsets = [0, 96], sizes = [8, 32], strides = [1, 1]} : vector<8x128xf32> to vector<8x32xf32>
    %142 = arith.mulf %139, %123 : vector<8x32xf32>
    %143 = arith.mulf %138, %140 : vector<8x32xf32>
    %144 = arith.addf %142, %143 : vector<8x32xf32>
    %145 = math.tanh %144 : vector<8x32xf32>
    %146 = arith.mulf %141, %145 : vector<8x32xf32>
    %147 = vector.extract_strided_slice %0 {offsets = [0, 6], sizes = [8, 1], strides = [1, 1]} : vector<8x8xf32> to vector<8x1xf32>
    %148 = vector.broadcast %147 : vector<8x1xf32> to vector<8x128xf32>
    %149 = arith.mulf %148, %4 : vector<8x128xf32>
    %150 = arith.addf %149, %7 : vector<8x128xf32>
    %cst_28 = arith.constant dense<0.000000e+00> : vector<8x128xf32>
    %151 = tpu.matmul %146, %1, %cst_28 {dimension_numbers = #tpu.dot_dimension_numbers<[1], [0], [0], [1], [0, 0, 1, 1], [], []>} : vector<8x32xf32>, vector<32x128xf32>, vector<8x128xf32> -> vector<8x128xf32>
    %152 = arith.addf %150, %151 : vector<8x128xf32>
    %153 = arith.mulf %152, %18 : vector<8x128xf32>
    %154 = math.tanh %153 : vector<8x128xf32>
    %cst_29 = arith.constant 5.000000e-01 : f32
    %155 = vector.broadcast %cst_29 : f32 to vector<8x128xf32>
    %156 = arith.mulf %155, %154 : vector<8x128xf32>
    %cst_30 = arith.constant 5.000000e-01 : f32
    %157 = vector.broadcast %cst_30 : f32 to vector<8x128xf32>
    %158 = arith.addf %156, %157 : vector<8x128xf32>
    %159 = vector.extract_strided_slice %158 {offsets = [0, 0], sizes = [8, 32], strides = [1, 1]} : vector<8x128xf32> to vector<8x32xf32>
    %160 = vector.extract_strided_slice %158 {offsets = [0, 32], sizes = [8, 32], strides = [1, 1]} : vector<8x128xf32> to vector<8x32xf32>
    %161 = vector.extract_strided_slice %154 {offsets = [0, 64], sizes = [8, 32], strides = [1, 1]} : vector<8x128xf32> to vector<8x32xf32>
    %162 = vector.extract_strided_slice %158 {offsets = [0, 96], sizes = [8, 32], strides = [1, 1]} : vector<8x128xf32> to vector<8x32xf32>
    %163 = arith.mulf %160, %144 : vector<8x32xf32>
    %164 = arith.mulf %159, %161 : vector<8x32xf32>
    %165 = arith.addf %163, %164 : vector<8x32xf32>
    %166 = math.tanh %165 : vector<8x32xf32>
    %167 = arith.mulf %162, %166 : vector<8x32xf32>
    %168 = vector.extract_strided_slice %0 {offsets = [0, 7], sizes = [8, 1], strides = [1, 1]} : vector<8x8xf32> to vector<8x1xf32>
    %169 = vector.broadcast %168 : vector<8x1xf32> to vector<8x128xf32>
    %170 = arith.mulf %169, %4 : vector<8x128xf32>
    %171 = arith.addf %170, %7 : vector<8x128xf32>
    %cst_31 = arith.constant dense<0.000000e+00> : vector<8x128xf32>
    %172 = tpu.matmul %167, %1, %cst_31 {dimension_numbers = #tpu.dot_dimension_numbers<[1], [0], [0], [1], [0, 0, 1, 1], [], []>} : vector<8x32xf32>, vector<32x128xf32>, vector<8x128xf32> -> vector<8x128xf32>
    %173 = arith.addf %171, %172 : vector<8x128xf32>
    %174 = arith.mulf %173, %18 : vector<8x128xf32>
    %175 = math.tanh %174 : vector<8x128xf32>
    %cst_32 = arith.constant 5.000000e-01 : f32
    %176 = vector.broadcast %cst_32 : f32 to vector<8x128xf32>
    %177 = arith.mulf %176, %175 : vector<8x128xf32>
    %cst_33 = arith.constant 5.000000e-01 : f32
    %178 = vector.broadcast %cst_33 : f32 to vector<8x128xf32>
    %179 = arith.addf %177, %178 : vector<8x128xf32>
    %180 = vector.extract_strided_slice %179 {offsets = [0, 0], sizes = [8, 32], strides = [1, 1]} : vector<8x128xf32> to vector<8x32xf32>
    %181 = vector.extract_strided_slice %179 {offsets = [0, 32], sizes = [8, 32], strides = [1, 1]} : vector<8x128xf32> to vector<8x32xf32>
    %182 = vector.extract_strided_slice %175 {offsets = [0, 64], sizes = [8, 32], strides = [1, 1]} : vector<8x128xf32> to vector<8x32xf32>
    %183 = vector.extract_strided_slice %179 {offsets = [0, 96], sizes = [8, 32], strides = [1, 1]} : vector<8x128xf32> to vector<8x32xf32>
    %184 = arith.mulf %181, %165 : vector<8x32xf32>
    %185 = arith.mulf %180, %182 : vector<8x32xf32>
    %186 = arith.addf %184, %185 : vector<8x32xf32>
    %187 = math.tanh %186 : vector<8x32xf32>
    %188 = arith.mulf %183, %187 : vector<8x32xf32>
    %c0_34 = arith.constant 0 : index
    %c0_35 = arith.constant 0 : index
    %189 = vector.load %arg4[%c0_34, %c0_35] : memref<32x1xf32, #tpu.memory_space<vmem>>, vector<32x1xf32>
    %cst_36 = arith.constant dense<0.000000e+00> : vector<8x1xf32>
    %190 = tpu.matmul %188, %189, %cst_36 {dimension_numbers = #tpu.dot_dimension_numbers<[1], [0], [0], [1], [0, 0, 1, 1], [], []>} : vector<8x32xf32>, vector<32x1xf32>, vector<8x1xf32> -> vector<8x1xf32>
    %c0_37 = arith.constant 0 : index
    %c0_38 = arith.constant 0 : index
    %191 = vector.load %arg5[%c0_37, %c0_38] : memref<1x1xf32, #tpu.memory_space<vmem>>, vector<1x1xf32>
    %192 = vector.broadcast %191 : vector<1x1xf32> to vector<8x1xf32>
    %193 = arith.addf %190, %192 : vector<8x1xf32>
    %c0_39 = arith.constant 0 : index
    %c0_40 = arith.constant 0 : index
    %194 = vector.load %arg6[%c0_39, %c0_40] : memref<8x1xf32, #tpu.memory_space<vmem>>, vector<8x1xf32>
    tpu.vector_store %arg6[%c0_39, %c0_40], %193 {strides = array<i32>} : memref<8x1xf32, #tpu.memory_space<vmem>>, vector<8x1xf32>,
    return
  }
}

</mosaic_0001>

<llo_original>
// kernel: simple_lstm_forward.1
$region0: #{simple_lstm_forward.1}
  #allocation0 [shape = 'u32[]', space=smem, size = 0x4, offset = 0x4, fixed_abs, tag = 'smem constant byte address 0x4 - core index']
  #allocation1 [shape = 'u32[144,128]{1,0:T(1,128)}', space=vmem, size = 0x12000, scoped, tag = 'internal scratch']
  #allocation2 [shape = 'f32[1,1]{1,0:T(1,128)S(1)}', space=vmem, size = 0x200, scoped, tag = 'scoped memory for simple_lstm_forward.1']
  %s0 = inlined_call_operand.vmem [shape: f32[8,8], index: 0, kind: input, shape index: {}]
  %s1 = inlined_call_operand.vmem [shape: f32[1,128], index: 1, kind: input, shape index: {}]
  %s2 = inlined_call_operand.vmem [shape: f32[1,128], index: 2, kind: input, shape index: {}]
  %s3 = inlined_call_operand.vmem [shape: f32[32,128], index: 3, kind: input, shape index: {}]
  %s4 = inlined_call_operand.vmem [shape: f32[32,1], index: 4, kind: input, shape index: {}]
  %s5 = inlined_call_operand.<no memory space> [shape: f32[1,1], index: 5, kind: input, shape index: {}]
  %s6 = inlined_call_operand.vmem [shape: f32[8,1], index: 6, kind: output, shape index: {}]
  %s7 = sld [smem:[#allocation0]]
  $region34: #{simple_lstm_forward.1} parent=0
    _
  %s9 = ssub.s32 1, %s7
  %s10 = scalar_select 0, %s9, %s7
  %v11 = vstv %s5
  %12 = vst [vmem:[#allocation2] sm:$0x1] %v11
  // Predicated region
  $region2: #{simple_lstm_forward.1} parent=0 // pred_check
    _
  $region3: #{simple_lstm_forward.1} parent=0 // pred_check_branch
    %14 = sbr.rel (0) target = $region5
  $region4: #{simple_lstm_forward.1} parent=0 // pred_region
    _
  $region5: #{simple_lstm_forward.1} parent=0 // pred_fallthru
    _
  // Predicated region
  $region6: #{simple_lstm_forward.1} parent=0 // pred_check
    _
  $region7: #{simple_lstm_forward.1} parent=0 // pred_check_branch
    %16 = sbr.rel (0) target = $region9
  $region8: #{simple_lstm_forward.1} parent=0 // pred_region
    _
  $region9: #{simple_lstm_forward.1} parent=0 // pred_fallthru
    _
  // Predicated region
  $region10: #{simple_lstm_forward.1} parent=0 // pred_check
    _
  $region11: #{simple_lstm_forward.1} parent=0 // pred_check_branch
    %18 = sbr.rel (0) target = $region13
  $region12: #{simple_lstm_forward.1} parent=0 // pred_region
    _
  $region13: #{simple_lstm_forward.1} parent=0 // pred_fallthru
    _
  // Predicated region
  $region14: #{simple_lstm_forward.1} parent=0 // pred_check
    _
  $region15: #{simple_lstm_forward.1} parent=0 // pred_check_branch
    %20 = sbr.rel (0) target = $region17
  $region16: #{simple_lstm_forward.1} parent=0 // pred_region
    _
  $region17: #{simple_lstm_forward.1} parent=0 // pred_fallthru
    _
  // Predicated region
  $region18: #{simple_lstm_forward.1} parent=0 // pred_check
    _
  $region19: #{simple_lstm_forward.1} parent=0 // pred_check_branch
    %22 = sbr.rel (0) target = $region21
  $region20: #{simple_lstm_forward.1} parent=0 // pred_region
    _
  $region21: #{simple_lstm_forward.1} parent=0 // pred_fallthru
    _
  // Predicated region
  $region22: #{simple_lstm_forward.1} parent=0 // pred_check
    _
  $region23: #{simple_lstm_forward.1} parent=0 // pred_check_branch
    %24 = sbr.rel (0) target = $region25
  $region24: #{simple_lstm_forward.1} parent=0 // pred_region
    _
  $region25: #{simple_lstm_forward.1} parent=0 // pred_fallthru
    _
  %v25 = vld [vmem:[%s0] sm:$0xff]
  %v26 = vld [vmem:[%s3] sm:$0xff]
  %v27 = vld [vmem:[%s3 + $0x8] sm:$0xff]
  %v28 = vld [vmem:[%s3 + $0x10] sm:$0xff]
  %v29 = vld [vmem:[%s3 + $0x18] sm:$0xff]
  %v30 = vld [vmem:[%s1] sm:$0x1]
  %v32 = vlaneseq
  %v33 = vshrl.u32 %v32, 7
  %v34 = vsub.s32 0, %v33
  %v35 = vrot.slane %v30, %v34
  %v37 = vld [vmem:[%s2] sm:$0x1]
  %v39 = vlaneseq
  %v40 = vshrl.u32 %v39, 7
  %v41 = vsub.s32 0, %v40
  %v42 = vrot.slane %v37, %v41
  %v44 = vlaneseq
  %v45 = vand.u32 %v44, 127
  %vm46 = vcmp.ge.s32.totalorder %v45, 64
  %vm47 = vcmp.lt.s32.totalorder %v45, 96
  %vm48 = vmand %vm46, %vm47
  %v49 = vsel %vm48, 1.0, 0.5
  %51 = vset.pattern.permute.xlu0 0
  %52 = vperm.xlu0 %51, %v25
  %v53 = vpop.permute.xlu0 %52
  %v55 = vmul.f32 %v53, %v35
  %v56 = vadd.f32 %v55, %v42
  %vm57 = vcmask 261120
  %v59 = vsel %vm57, 0.0, 0
  %61 = vmatprep.subr.mxu0 0.0
  %62 = vmatpush1.msra.mxu0 0.0
  %63 = vmatprep.subr.mxu0 0.0
  %64 = vmatpush1.msra.mxu0 0.0
  %65 = vmatprep.subr.mxu0 0.0
  %66 = vmatpush1.msra.mxu0 0.0
  %67 = vmatprep.subr.mxu0 0.0
  %68 = vmatpush1.msra.mxu0 0.0
  %69 = vmatprep.subr.mxu0 0.0
  %70 = vmatpush1.msra.mxu0 0.0
  %71 = vmatprep.subr.mxu0 0.0
  %72 = vmatpush1.msra.mxu0 0.0
  %73 = vmatprep.subr.mxu0 0.0
  %74 = vmatpush1.msra.mxu0 0.0
  %75 = vmatprep.subr.mxu0 0.0
  %76 = vmatpush1.msra.mxu0 0.0
  %77 = vmatprep.subr.mxu0 0.0
  %78 = vmatpush1.msra.mxu0 0.0
  %79 = vmatprep.subr.mxu0 0.0
  %80 = vmatpush1.msra.mxu0 0.0
  %81 = vmatprep.subr.mxu0 0.0
  %82 = vmatpush1.msra.mxu0 0.0
  %83 = vmatprep.subr.mxu0 0.0
  %84 = vmatpush1.msra.mxu0 0.0
  %85 = vmatprep.subr.mxu0 0.0
  %86 = vmatpush1.msra.mxu0 %v29
  %87 = vmatprep.subr.mxu0 0.0
  %88 = vmatpush1.msra.mxu0 %v28
  %89 = vmatprep.subr.mxu0 0.0
  %90 = vmatpush1.msra.mxu0 %v27
  %91 = vmatprep.subr.mxu0 0.0
  %92 = vmatpush1.msra.mxu0 %v26
  %93 = vmatprep.subr.mxu0 0.0
  %94 = vmatpush2.msra.mxu0 0.0
  %95 = vmatprep.subr.mxu0 0.0
  %96 = vmatpush2.msra.mxu0 0.0
  %97 = vmatprep.subr.mxu0 0.0
  %98 = vmatpush2.msra.mxu0 0.0
  %99 = vmatprep.subr.mxu0 0.0
  %100 = vmatpush2.msra.mxu0 0.0
  %101 = vmatprep.subr.mxu0 0.0
  %102 = vmatpush2.msra.mxu0 0.0
  %103 = vmatprep.subr.mxu0 0.0
  %104 = vmatpush2.msra.mxu0 0.0
  %105 = vmatprep.subr.mxu0 0.0
  %106 = vmatpush2.msra.mxu0 0.0
  %107 = vmatprep.subr.mxu0 0.0
  %108 = vmatpush2.msra.mxu0 0.0
  %109 = vmatprep.subr.mxu0 0.0
  %110 = vmatpush2.msra.mxu0 0.0
  %111 = vmatprep.subr.mxu0 0.0
  %112 = vmatpush2.msra.mxu0 0.0
  %113 = vmatprep.subr.mxu0 0.0
  %114 = vmatpush2.msra.mxu0 0.0
  %115 = vmatprep.subr.mxu0 0.0
  %116 = vmatpush2.msra.mxu0 0.0
  %117 = vmatprep.subr.mxu0 0.0
  %118 = vmatpush2.msra.mxu0 0.0
  %119 = vmatprep.subr.mxu0 0.0
  %120 = vmatpush2.msra.mxu0 0.0
  %121 = vmatprep.subr.mxu0 0.0
  %122 = vmatpush2.msra.mxu0 0.0
  %123 = vmatprep.subr.mxu0 0.0
  %124 = vmatpush2.msra.mxu0 0.0
  %125 = vmatprep.mubr.f32.mxu0 0.0
  %126 = vmatmul.mubr.f32.gmra.mxu0 %v59
  %v127 = vpop.f32.mrf.mxu0
  %v128 = vadd.f32 0.0, %v127
  %v129 = vpop.f32.mrf.mxu0
  %130 = vdwg.mxu0
  %v131 = vadd.f32 %v56, %v128
  %v132 = vmul.f32 %v131, %v49
  %v133 = vtanh.pop %v132
  %v134 = vmul.f32 %v133, 0.5
  %v135 = vadd.f32 %v134, 0.5
  %v136 = vmul.f32 %v135, 0.0
  %138 = vrot.lane.b32.xlu0 %v133, 64
  %v139 = vpop.permute.xlu0 %138
  %v141 = vmul.f32 %v135, %v139
  %143 = vrot.lane.b32.xlu0 %v141, 32
  %v144 = vpop.permute.xlu0 %143
  %v146 = vadd.f32 %v136, %v144
  %v147 = vtanh.pop %v146
  %149 = vrot.lane.b32.xlu0 %v147, 64
  %v150 = vpop.permute.xlu0 %149
  %v152 = vmul.f32 %v135, %v150
  %153 = vset.pattern.permute.xlu0 1
  %154 = vperm.xlu0 %153, %v25
  %v155 = vpop.permute.xlu0 %154
  %v157 = vmul.f32 %v155, %v35
  %v158 = vadd.f32 %v157, %v42
  %160 = vrot.lane.b32.xlu0 %v152, 32
  %v161 = vpop.permute.xlu0 %160
  %v162 = vsel %vm57, %v161, 0
  %164 = vmatprep.subr.mxu0 0.0
  %165 = vmatpush1.msra.mxu0 0.0
  %166 = vmatprep.subr.mxu0 0.0
  %167 = vmatpush1.msra.mxu0 0.0
  %168 = vmatprep.subr.mxu0 0.0
  %169 = vmatpush1.msra.mxu0 0.0
  %170 = vmatprep.subr.mxu0 0.0
  %171 = vmatpush1.msra.mxu0 0.0
  %172 = vmatprep.subr.mxu0 0.0
  %173 = vmatpush1.msra.mxu0 0.0
  %174 = vmatprep.subr.mxu0 0.0
  %175 = vmatpush1.msra.mxu0 0.0
  %176 = vmatprep.subr.mxu0 0.0
  %177 = vmatpush1.msra.mxu0 0.0
  %178 = vmatprep.subr.mxu0 0.0
  %179 = vmatpush1.msra.mxu0 0.0
  %180 = vmatprep.subr.mxu0 0.0
  %181 = vmatpush1.msra.mxu0 0.0
  %182 = vmatprep.subr.mxu0 0.0
  %183 = vmatpush1.msra.mxu0 0.0
  %184 = vmatprep.subr.mxu0 0.0
  %185 = vmatpush1.msra.mxu0 0.0
  %186 = vmatprep.subr.mxu0 0.0
  %187 = vmatpush1.msra.mxu0 0.0
  %188 = vmatprep.subr.mxu0 0.0
  %189 = vmatpush1.msra.mxu0 %v29
  %190 = vmatprep.subr.mxu0 0.0
  %191 = vmatpush1.msra.mxu0 %v28
  %192 = vmatprep.subr.mxu0 0.0
  %193 = vmatpush1.msra.mxu0 %v27
  %194 = vmatprep.subr.mxu0 0.0
  %195 = vmatpush1.msra.mxu0 %v26
  %196 = vmatprep.subr.mxu0 0.0
  %197 = vmatpush2.msra.mxu0 0.0
  %198 = vmatprep.subr.mxu0 0.0
  %199 = vmatpush2.msra.mxu0 0.0
  %200 = vmatprep.subr.mxu0 0.0
  %201 = vmatpush2.msra.mxu0 0.0
  %202 = vmatprep.subr.mxu0 0.0
  %203 = vmatpush2.msra.mxu0 0.0
  %204 = vmatprep.subr.mxu0 0.0
  %205 = vmatpush2.msra.mxu0 0.0
  %206 = vmatprep.subr.mxu0 0.0
  %207 = vmatpush2.msra.mxu0 0.0
  %208 = vmatprep.subr.mxu0 0.0
  %209 = vmatpush2.msra.mxu0 0.0
  %210 = vmatprep.subr.mxu0 0.0
  %211 = vmatpush2.msra.mxu0 0.0
  %212 = vmatprep.subr.mxu0 0.0
  %213 = vmatpush2.msra.mxu0 0.0
  %214 = vmatprep.subr.mxu0 0.0
  %215 = vmatpush2.msra.mxu0 0.0
  %216 = vmatprep.subr.mxu0 0.0
  %217 = vmatpush2.msra.mxu0 0.0
  %218 = vmatprep.subr.mxu0 0.0
  %219 = vmatpush2.msra.mxu0 0.0
  %220 = vmatprep.subr.mxu0 0.0
  %221 = vmatpush2.msra.mxu0 0.0
  %222 = vmatprep.subr.mxu0 0.0
  %223 = vmatpush2.msra.mxu0 0.0
  %224 = vmatprep.subr.mxu0 0.0
  %225 = vmatpush2.msra.mxu0 0.0
  %226 = vmatprep.subr.mxu0 0.0
  %227 = vmatpush2.msra.mxu0 0.0
  %228 = vmatprep.mubr.f32.mxu0 0.0
  %229 = vmatmul.mubr.f32.gmra.mxu0 %v162
  %v230 = vpop.f32.mrf.mxu0
  %v231 = vadd.f32 0.0, %v230
  %v232 = vpop.f32.mrf.mxu0
  %233 = vdwg.mxu0
  %v234 = vadd.f32 %v158, %v231
  %v235 = vmul.f32 %v234, %v49
  %v236 = vtanh.pop %v235
  %v237 = vmul.f32 %v236, 0.5
  %v238 = vadd.f32 %v237, 0.5
  %v239 = vmul.f32 %v238, %v146
  %241 = vrot.lane.b32.xlu0 %v236, 64
  %v242 = vpop.permute.xlu0 %241
  %v244 = vmul.f32 %v238, %v242
  %246 = vrot.lane.b32.xlu0 %v244, 32
  %v247 = vpop.permute.xlu0 %246
  %v249 = vadd.f32 %v239, %v247
  %v250 = vtanh.pop %v249
  %252 = vrot.lane.b32.xlu0 %v250, 64
  %v253 = vpop.permute.xlu0 %252
  %v255 = vmul.f32 %v238, %v253
  %256 = vset.pattern.permute.xlu0 2
  %257 = vperm.xlu0 %256, %v25
  %v258 = vpop.permute.xlu0 %257
  %v260 = vmul.f32 %v258, %v35
  %v261 = vadd.f32 %v260, %v42
  %263 = vrot.lane.b32.xlu0 %v255, 32
  %v264 = vpop.permute.xlu0 %263
  %v265 = vsel %vm57, %v264, 0
  %267 = vmatprep.subr.mxu0 0.0
  %268 = vmatpush1.msra.mxu0 0.0
  %269 = vmatprep.subr.mxu0 0.0
  %270 = vmatpush1.msra.mxu0 0.0
  %271 = vmatprep.subr.mxu0 0.0
  %272 = vmatpush1.msra.mxu0 0.0
  %273 = vmatprep.subr.mxu0 0.0
  %274 = vmatpush1.msra.mxu0 0.0
  %275 = vmatprep.subr.mxu0 0.0
  %276 = vmatpush1.msra.mxu0 0.0
  %277 = vmatprep.subr.mxu0 0.0
  %278 = vmatpush1.msra.mxu0 0.0
  %279 = vmatprep.subr.mxu0 0.0
  %280 = vmatpush1.msra.mxu0 0.0
  %281 = vmatprep.subr.mxu0 0.0
  %282 = vmatpush1.msra.mxu0 0.0
  %283 = vmatprep.subr.mxu0 0.0
  %284 = vmatpush1.msra.mxu0 0.0
  %285 = vmatprep.subr.mxu0 0.0
  %286 = vmatpush1.msra.mxu0 0.0
  %287 = vmatprep.subr.mxu0 0.0
  %288 = vmatpush1.msra.mxu0 0.0
  %289 = vmatprep.subr.mxu0 0.0
  %290 = vmatpush1.msra.mxu0 0.0
  %291 = vmatprep.subr.mxu0 0.0
  %292 = vmatpush1.msra.mxu0 %v29
  %293 = vmatprep.subr.mxu0 0.0
  %294 = vmatpush1.msra.mxu0 %v28
  %295 = vmatprep.subr.mxu0 0.0
  %296 = vmatpush1.msra.mxu0 %v27
  %297 = vmatprep.subr.mxu0 0.0
  %298 = vmatpush1.msra.mxu0 %v26
  %299 = vmatprep.subr.mxu0 0.0
  %300 = vmatpush2.msra.mxu0 0.0
  %301 = vmatprep.subr.mxu0 0.0
  %302 = vmatpush2.msra.mxu0 0.0
  %303 = vmatprep.subr.mxu0 0.0
  %304 = vmatpush2.msra.mxu0 0.0
  %305 = vmatprep.subr.mxu0 0.0
  %306 = vmatpush2.msra.mxu0 0.0
  %307 = vmatprep.subr.mxu0 0.0
  %308 = vmatpush2.msra.mxu0 0.0
  %309 = vmatprep.subr.mxu0 0.0
  %310 = vmatpush2.msra.mxu0 0.0
  %311 = vmatprep.subr.mxu0 0.0
  %312 = vmatpush2.msra.mxu0 0.0
  %313 = vmatprep.subr.mxu0 0.0
  %314 = vmatpush2.msra.mxu0 0.0
  %315 = vmatprep.subr.mxu0 0.0
  %316 = vmatpush2.msra.mxu0 0.0
  %317 = vmatprep.subr.mxu0 0.0
  %318 = vmatpush2.msra.mxu0 0.0
  %319 = vmatprep.subr.mxu0 0.0
  %320 = vmatpush2.msra.mxu0 0.0
  %321 = vmatprep.subr.mxu0 0.0
  %322 = vmatpush2.msra.mxu0 0.0
  %323 = vmatprep.subr.mxu0 0.0
  %324 = vmatpush2.msra.mxu0 0.0
  %325 = vmatprep.subr.mxu0 0.0
  %326 = vmatpush2.msra.mxu0 0.0
  %327 = vmatprep.subr.mxu0 0.0
  %328 = vmatpush2.msra.mxu0 0.0
  %329 = vmatprep.subr.mxu0 0.0
  %330 = vmatpush2.msra.mxu0 0.0
  %331 = vmatprep.mubr.f32.mxu0 0.0
  %332 = vmatmul.mubr.f32.gmra.mxu0 %v265
  %v333 = vpop.f32.mrf.mxu0
  %v334 = vadd.f32 0.0, %v333
  %v335 = vpop.f32.mrf.mxu0
  %336 = vdwg.mxu0
  %v337 = vadd.f32 %v261, %v334
  %v338 = vmul.f32 %v337, %v49
  %v339 = vtanh.pop %v338
  %v340 = vmul.f32 %v339, 0.5
  %v341 = vadd.f32 %v340, 0.5
  %v342 = vmul.f32 %v341, %v249
  %344 = vrot.lane.b32.xlu0 %v339, 64
  %v345 = vpop.permute.xlu0 %344
  %v347 = vmul.f32 %v341, %v345
  %349 = vrot.lane.b32.xlu0 %v347, 32
  %v350 = vpop.permute.xlu0 %349
  %v352 = vadd.f32 %v342, %v350
  %v353 = vtanh.pop %v352
  %355 = vrot.lane.b32.xlu0 %v353, 64
  %v356 = vpop.permute.xlu0 %355
  %v358 = vmul.f32 %v341, %v356
  %359 = vset.pattern.permute.xlu0 3
  %360 = vperm.xlu0 %359, %v25
  %v361 = vpop.permute.xlu0 %360
  %v363 = vmul.f32 %v361, %v35
  %v364 = vadd.f32 %v363, %v42
  %366 = vrot.lane.b32.xlu0 %v358, 32
  %v367 = vpop.permute.xlu0 %366
  %v368 = vsel %vm57, %v367, 0
  %370 = vmatprep.subr.mxu0 0.0
  %371 = vmatpush1.msra.mxu0 0.0
  %372 = vmatprep.subr.mxu0 0.0
  %373 = vmatpush1.msra.mxu0 0.0
  %374 = vmatprep.subr.mxu0 0.0
  %375 = vmatpush1.msra.mxu0 0.0
  %376 = vmatprep.subr.mxu0 0.0
  %377 = vmatpush1.msra.mxu0 0.0
  %378 = vmatprep.subr.mxu0 0.0
  %379 = vmatpush1.msra.mxu0 0.0
  %380 = vmatprep.subr.mxu0 0.0
  %381 = vmatpush1.msra.mxu0 0.0
  %382 = vmatprep.subr.mxu0 0.0
  %383 = vmatpush1.msra.mxu0 0.0
  %384 = vmatprep.subr.mxu0 0.0
  %385 = vmatpush1.msra.mxu0 0.0
  %386 = vmatprep.subr.mxu0 0.0
  %387 = vmatpush1.msra.mxu0 0.0
  %388 = vmatprep.subr.mxu0 0.0
  %389 = vmatpush1.msra.mxu0 0.0
  %390 = vmatprep.subr.mxu0 0.0
  %391 = vmatpush1.msra.mxu0 0.0
  %392 = vmatprep.subr.mxu0 0.0
  %393 = vmatpush1.msra.mxu0 0.0
  %394 = vmatprep.subr.mxu0 0.0
  %395 = vmatpush1.msra.mxu0 %v29
  %396 = vmatprep.subr.mxu0 0.0
  %397 = vmatpush1.msra.mxu0 %v28
  %398 = vmatprep.subr.mxu0 0.0
  %399 = vmatpush1.msra.mxu0 %v27
  %400 = vmatprep.subr.mxu0 0.0
  %401 = vmatpush1.msra.mxu0 %v26
  %402 = vmatprep.subr.mxu0 0.0
  %403 = vmatpush2.msra.mxu0 0.0
  %404 = vmatprep.subr.mxu0 0.0
  %405 = vmatpush2.msra.mxu0 0.0
  %406 = vmatprep.subr.mxu0 0.0
  %407 = vmatpush2.msra.mxu0 0.0
  %408 = vmatprep.subr.mxu0 0.0
  %409 = vmatpush2.msra.mxu0 0.0
  %410 = vmatprep.subr.mxu0 0.0
  %411 = vmatpush2.msra.mxu0 0.0
  %412 = vmatprep.subr.mxu0 0.0
  %413 = vmatpush2.msra.mxu0 0.0
  %414 = vmatprep.subr.mxu0 0.0
  %415 = vmatpush2.msra.mxu0 0.0
  %416 = vmatprep.subr.mxu0 0.0
  %417 = vmatpush2.msra.mxu0 0.0
  %418 = vmatprep.subr.mxu0 0.0
  %419 = vmatpush2.msra.mxu0 0.0
  %420 = vmatprep.subr.mxu0 0.0
  %421 = vmatpush2.msra.mxu0 0.0
  %422 = vmatprep.subr.mxu0 0.0
  %423 = vmatpush2.msra.mxu0 0.0
  %424 = vmatprep.subr.mxu0 0.0
  %425 = vmatpush2.msra.mxu0 0.0
  %426 = vmatprep.subr.mxu0 0.0
  %427 = vmatpush2.msra.mxu0 0.0
  %428 = vmatprep.subr.mxu0 0.0
  %429 = vmatpush2.msra.mxu0 0.0
  %430 = vmatprep.subr.mxu0 0.0
  %431 = vmatpush2.msra.mxu0 0.0
  %432 = vmatprep.subr.mxu0 0.0
  %433 = vmatpush2.msra.mxu0 0.0
  %434 = vmatprep.mubr.f32.mxu0 0.0
  %435 = vmatmul.mubr.f32.gmra.mxu0 %v368
  %v436 = vpop.f32.mrf.mxu0
  %v437 = vadd.f32 0.0, %v436
  %v438 = vpop.f32.mrf.mxu0
  %439 = vdwg.mxu0
  %v440 = vadd.f32 %v364, %v437
  %v441 = vmul.f32 %v440, %v49
  %v442 = vtanh.pop %v441
  %v443 = vmul.f32 %v442, 0.5
  %v444 = vadd.f32 %v443, 0.5
  %v445 = vmul.f32 %v444, %v352
  %447 = vrot.lane.b32.xlu0 %v442, 64
  %v448 = vpop.permute.xlu0 %447
  %v450 = vmul.f32 %v444, %v448
  %452 = vrot.lane.b32.xlu0 %v450, 32
  %v453 = vpop.permute.xlu0 %452
  %v455 = vadd.f32 %v445, %v453
  %v456 = vtanh.pop %v455
  %458 = vrot.lane.b32.xlu0 %v456, 64
  %v459 = vpop.permute.xlu0 %458
  %v461 = vmul.f32 %v444, %v459
  %462 = vset.pattern.permute.xlu0 4
  %463 = vperm.xlu0 %462, %v25
  %v464 = vpop.permute.xlu0 %463
  %v466 = vmul.f32 %v464, %v35
  %v467 = vadd.f32 %v466, %v42
  %469 = vrot.lane.b32.xlu0 %v461, 32
  %v470 = vpop.permute.xlu0 %469
  %v471 = vsel %vm57, %v470, 0
  %473 = vmatprep.subr.mxu0 0.0
  %474 = vmatpush1.msra.mxu0 0.0
  %475 = vmatprep.subr.mxu0 0.0
  %476 = vmatpush1.msra.mxu0 0.0
  %477 = vmatprep.subr.mxu0 0.0
  %478 = vmatpush1.msra.mxu0 0.0
  %479 = vmatprep.subr.mxu0 0.0
  %480 = vmatpush1.msra.mxu0 0.0
  %481 = vmatprep.subr.mxu0 0.0
  %482 = vmatpush1.msra.mxu0 0.0
  %483 = vmatprep.subr.mxu0 0.0
  %484 = vmatpush1.msra.mxu0 0.0
  %485 = vmatprep.subr.mxu0 0.0
  %486 = vmatpush1.msra.mxu0 0.0
  %487 = vmatprep.subr.mxu0 0.0
  %488 = vmatpush1.msra.mxu0 0.0
  %489 = vmatprep.subr.mxu0 0.0
  %490 = vmatpush1.msra.mxu0 0.0
  %491 = vmatprep.subr.mxu0 0.0
  %492 = vmatpush1.msra.mxu0 0.0
  %493 = vmatprep.subr.mxu0 0.0
  %494 = vmatpush1.msra.mxu0 0.0
  %495 = vmatprep.subr.mxu0 0.0
  %496 = vmatpush1.msra.mxu0 0.0
  %497 = vmatprep.subr.mxu0 0.0
  %498 = vmatpush1.msra.mxu0 %v29
  %499 = vmatprep.subr.mxu0 0.0
  %500 = vmatpush1.msra.mxu0 %v28
  %501 = vmatprep.subr.mxu0 0.0
  %502 = vmatpush1.msra.mxu0 %v27
  %503 = vmatprep.subr.mxu0 0.0
  %504 = vmatpush1.msra.mxu0 %v26
  %505 = vmatprep.subr.mxu0 0.0
  %506 = vmatpush2.msra.mxu0 0.0
  %507 = vmatprep.subr.mxu0 0.0
  %508 = vmatpush2.msra.mxu0 0.0
  %509 = vmatprep.subr.mxu0 0.0
  %510 = vmatpush2.msra.mxu0 0.0
  %511 = vmatprep.subr.mxu0 0.0
  %512 = vmatpush2.msra.mxu0 0.0
  %513 = vmatprep.subr.mxu0 0.0
  %514 = vmatpush2.msra.mxu0 0.0
  %515 = vmatprep.subr.mxu0 0.0
  %516 = vmatpush2.msra.mxu0 0.0
  %517 = vmatprep.subr.mxu0 0.0
  %518 = vmatpush2.msra.mxu0 0.0
  %519 = vmatprep.subr.mxu0 0.0
  %520 = vmatpush2.msra.mxu0 0.0
  %521 = vmatprep.subr.mxu0 0.0
  %522 = vmatpush2.msra.mxu0 0.0
  %523 = vmatprep.subr.mxu0 0.0
  %524 = vmatpush2.msra.mxu0 0.0
  %525 = vmatprep.subr.mxu0 0.0
  %526 = vmatpush2.msra.mxu0 0.0
  %527 = vmatprep.subr.mxu0 0.0
  %528 = vmatpush2.msra.mxu0 0.0
  %529 = vmatprep.subr.mxu0 0.0
  %530 = vmatpush2.msra.mxu0 0.0
  %531 = vmatprep.subr.mxu0 0.0
  %532 = vmatpush2.msra.mxu0 0.0
  %533 = vmatprep.subr.mxu0 0.0
  %534 = vmatpush2.msra.mxu0 0.0
  %535 = vmatprep.subr.mxu0 0.0
  %536 = vmatpush2.msra.mxu0 0.0
  %537 = vmatprep.mubr.f32.mxu0 0.0
  %538 = vmatmul.mubr.f32.gmra.mxu0 %v471
  %v539 = vpop.f32.mrf.mxu0
  %v540 = vadd.f32 0.0, %v539
  %v541 = vpop.f32.mrf.mxu0
  %542 = vdwg.mxu0
  %v543 = vadd.f32 %v467, %v540
  %v544 = vmul.f32 %v543, %v49
  %v545 = vtanh.pop %v544
  %v546 = vmul.f32 %v545, 0.5
  %v547 = vadd.f32 %v546, 0.5
  %v548 = vmul.f32 %v547, %v455
  %550 = vrot.lane.b32.xlu0 %v545, 64
  %v551 = vpop.permute.xlu0 %550
  %v553 = vmul.f32 %v547, %v551
  %555 = vrot.lane.b32.xlu0 %v553, 32
  %v556 = vpop.permute.xlu0 %555
  %v558 = vadd.f32 %v548, %v556
  %v559 = vtanh.pop %v558
  %561 = vrot.lane.b32.xlu0 %v559, 64
  %v562 = vpop.permute.xlu0 %561
  %v564 = vmul.f32 %v547, %v562
  %565 = vset.pattern.permute.xlu0 5
  %566 = vperm.xlu0 %565, %v25
  %v567 = vpop.permute.xlu0 %566
  %v569 = vmul.f32 %v567, %v35
  %v570 = vadd.f32 %v569, %v42
  %572 = vrot.lane.b32.xlu0 %v564, 32
  %v573 = vpop.permute.xlu0 %572
  %v574 = vsel %vm57, %v573, 0
  %576 = vmatprep.subr.mxu0 0.0
  %577 = vmatpush1.msra.mxu0 0.0
  %578 = vmatprep.subr.mxu0 0.0
  %579 = vmatpush1.msra.mxu0 0.0
  %580 = vmatprep.subr.mxu0 0.0
  %581 = vmatpush1.msra.mxu0 0.0
  %582 = vmatprep.subr.mxu0 0.0
  %583 = vmatpush1.msra.mxu0 0.0
  %584 = vmatprep.subr.mxu0 0.0
  %585 = vmatpush1.msra.mxu0 0.0
  %586 = vmatprep.subr.mxu0 0.0
  %587 = vmatpush1.msra.mxu0 0.0
  %588 = vmatprep.subr.mxu0 0.0
  %589 = vmatpush1.msra.mxu0 0.0
  %590 = vmatprep.subr.mxu0 0.0
  %591 = vmatpush1.msra.mxu0 0.0
  %592 = vmatprep.subr.mxu0 0.0
  %593 = vmatpush1.msra.mxu0 0.0
  %594 = vmatprep.subr.mxu0 0.0
  %595 = vmatpush1.msra.mxu0 0.0
  %596 = vmatprep.subr.mxu0 0.0
  %597 = vmatpush1.msra.mxu0 0.0
  %598 = vmatprep.subr.mxu0 0.0
  %599 = vmatpush1.msra.mxu0 0.0
  %600 = vmatprep.subr.mxu0 0.0
  %601 = vmatpush1.msra.mxu0 %v29
  %602 = vmatprep.subr.mxu0 0.0
  %603 = vmatpush1.msra.mxu0 %v28
  %604 = vmatprep.subr.mxu0 0.0
  %605 = vmatpush1.msra.mxu0 %v27
  %606 = vmatprep.subr.mxu0 0.0
  %607 = vmatpush1.msra.mxu0 %v26
  %608 = vmatprep.subr.mxu0 0.0
  %609 = vmatpush2.msra.mxu0 0.0
  %610 = vmatprep.subr.mxu0 0.0
  %611 = vmatpush2.msra.mxu0 0.0
  %612 = vmatprep.subr.mxu0 0.0
  %613 = vmatpush2.msra.mxu0 0.0
  %614 = vmatprep.subr.mxu0 0.0
  %615 = vmatpush2.msra.mxu0 0.0
  %616 = vmatprep.subr.mxu0 0.0
  %617 = vmatpush2.msra.mxu0 0.0
  %618 = vmatprep.subr.mxu0 0.0
  %619 = vmatpush2.msra.mxu0 0.0
  %620 = vmatprep.subr.mxu0 0.0
  %621 = vmatpush2.msra.mxu0 0.0
  %622 = vmatprep.subr.mxu0 0.0
  %623 = vmatpush2.msra.mxu0 0.0
  %624 = vmatprep.subr.mxu0 0.0
  %625 = vmatpush2.msra.mxu0 0.0
  %626 = vmatprep.subr.mxu0 0.0
  %627 = vmatpush2.msra.mxu0 0.0
  %628 = vmatprep.subr.mxu0 0.0
  %629 = vmatpush2.msra.mxu0 0.0
  %630 = vmatprep.subr.mxu0 0.0
  %631 = vmatpush2.msra.mxu0 0.0
  %632 = vmatprep.subr.mxu0 0.0
  %633 = vmatpush2.msra.mxu0 0.0
  %634 = vmatprep.subr.mxu0 0.0
  %635 = vmatpush2.msra.mxu0 0.0
  %636 = vmatprep.subr.mxu0 0.0
  %637 = vmatpush2.msra.mxu0 0.0
  %638 = vmatprep.subr.mxu0 0.0
  %639 = vmatpush2.msra.mxu0 0.0
  %640 = vmatprep.mubr.f32.mxu0 0.0
  %641 = vmatmul.mubr.f32.gmra.mxu0 %v574
  %v642 = vpop.f32.mrf.mxu0
  %v643 = vadd.f32 0.0, %v642
  %v644 = vpop.f32.mrf.mxu0
  %645 = vdwg.mxu0
  %v646 = vadd.f32 %v570, %v643
  %v647 = vmul.f32 %v646, %v49
  %v648 = vtanh.pop %v647
  %v649 = vmul.f32 %v648, 0.5
  %v650 = vadd.f32 %v649, 0.5
  %v651 = vmul.f32 %v650, %v558
  %653 = vrot.lane.b32.xlu0 %v648, 64
  %v654 = vpop.permute.xlu0 %653
  %v656 = vmul.f32 %v650, %v654
  %658 = vrot.lane.b32.xlu0 %v656, 32
  %v659 = vpop.permute.xlu0 %658
  %v661 = vadd.f32 %v651, %v659
  %v662 = vtanh.pop %v661
  %664 = vrot.lane.b32.xlu0 %v662, 64
  %v665 = vpop.permute.xlu0 %664
  %v667 = vmul.f32 %v650, %v665
  %668 = vset.pattern.permute.xlu0 6
  %669 = vperm.xlu0 %668, %v25
  %v670 = vpop.permute.xlu0 %669
  %v672 = vmul.f32 %v670, %v35
  %v673 = vadd.f32 %v672, %v42
  %675 = vrot.lane.b32.xlu0 %v667, 32
  %v676 = vpop.permute.xlu0 %675
  %v677 = vsel %vm57, %v676, 0
  %679 = vmatprep.subr.mxu0 0.0
  %680 = vmatpush1.msra.mxu0 0.0
  %681 = vmatprep.subr.mxu0 0.0
  %682 = vmatpush1.msra.mxu0 0.0
  %683 = vmatprep.subr.mxu0 0.0
  %684 = vmatpush1.msra.mxu0 0.0
  %685 = vmatprep.subr.mxu0 0.0
  %686 = vmatpush1.msra.mxu0 0.0
  %687 = vmatprep.subr.mxu0 0.0
  %688 = vmatpush1.msra.mxu0 0.0
  %689 = vmatprep.subr.mxu0 0.0
  %690 = vmatpush1.msra.mxu0 0.0
  %691 = vmatprep.subr.mxu0 0.0
  %692 = vmatpush1.msra.mxu0 0.0
  %693 = vmatprep.subr.mxu0 0.0
  %694 = vmatpush1.msra.mxu0 0.0
  %695 = vmatprep.subr.mxu0 0.0
  %696 = vmatpush1.msra.mxu0 0.0
  %697 = vmatprep.subr.mxu0 0.0
  %698 = vmatpush1.msra.mxu0 0.0
  %699 = vmatprep.subr.mxu0 0.0
  %700 = vmatpush1.msra.mxu0 0.0
  %701 = vmatprep.subr.mxu0 0.0
  %702 = vmatpush1.msra.mxu0 0.0
  %703 = vmatprep.subr.mxu0 0.0
  %704 = vmatpush1.msra.mxu0 %v29
  %705 = vmatprep.subr.mxu0 0.0
  %706 = vmatpush1.msra.mxu0 %v28
  %707 = vmatprep.subr.mxu0 0.0
  %708 = vmatpush1.msra.mxu0 %v27
  %709 = vmatprep.subr.mxu0 0.0
  %710 = vmatpush1.msra.mxu0 %v26
  %711 = vmatprep.subr.mxu0 0.0
  %712 = vmatpush2.msra.mxu0 0.0
  %713 = vmatprep.subr.mxu0 0.0
  %714 = vmatpush2.msra.mxu0 0.0
  %715 = vmatprep.subr.mxu0 0.0
  %716 = vmatpush2.msra.mxu0 0.0
  %717 = vmatprep.subr.mxu0 0.0
  %718 = vmatpush2.msra.mxu0 0.0
  %719 = vmatprep.subr.mxu0 0.0
  %720 = vmatpush2.msra.mxu0 0.0
  %721 = vmatprep.subr.mxu0 0.0
  %722 = vmatpush2.msra.mxu0 0.0
  %723 = vmatprep.subr.mxu0 0.0
  %724 = vmatpush2.msra.mxu0 0.0
  %725 = vmatprep.subr.mxu0 0.0
  %726 = vmatpush2.msra.mxu0 0.0
  %727 = vmatprep.subr.mxu0 0.0
  %728 = vmatpush2.msra.mxu0 0.0
  %729 = vmatprep.subr.mxu0 0.0
  %730 = vmatpush2.msra.mxu0 0.0
  %731 = vmatprep.subr.mxu0 0.0
  %732 = vmatpush2.msra.mxu0 0.0
  %733 = vmatprep.subr.mxu0 0.0
  %734 = vmatpush2.msra.mxu0 0.0
  %735 = vmatprep.subr.mxu0 0.0
  %736 = vmatpush2.msra.mxu0 0.0
  %737 = vmatprep.subr.mxu0 0.0
  %738 = vmatpush2.msra.mxu0 0.0
  %739 = vmatprep.subr.mxu0 0.0
  %740 = vmatpush2.msra.mxu0 0.0
  %741 = vmatprep.subr.mxu0 0.0
  %742 = vmatpush2.msra.mxu0 0.0
  %743 = vmatprep.mubr.f32.mxu0 0.0
  %744 = vmatmul.mubr.f32.gmra.mxu0 %v677
  %v745 = vpop.f32.mrf.mxu0
  %v746 = vadd.f32 0.0, %v745
  %v747 = vpop.f32.mrf.mxu0
  %748 = vdwg.mxu0
  %v749 = vadd.f32 %v673, %v746
  %v750 = vmul.f32 %v749, %v49
  %v751 = vtanh.pop %v750
  %v752 = vmul.f32 %v751, 0.5
  %v753 = vadd.f32 %v752, 0.5
  %v754 = vmul.f32 %v753, %v661
  %756 = vrot.lane.b32.xlu0 %v751, 64
  %v757 = vpop.permute.xlu0 %756
  %v759 = vmul.f32 %v753, %v757
  %761 = vrot.lane.b32.xlu0 %v759, 32
  %v762 = vpop.permute.xlu0 %761
  %v764 = vadd.f32 %v754, %v762
  %v765 = vtanh.pop %v764
  %767 = vrot.lane.b32.xlu0 %v765, 64
  %v768 = vpop.permute.xlu0 %767
  %v770 = vmul.f32 %v753, %v768
  %771 = vset.pattern.permute.xlu0 7
  %772 = vperm.xlu0 %771, %v25
  %v773 = vpop.permute.xlu0 %772
  %v775 = vmul.f32 %v773, %v35
  %v776 = vadd.f32 %v775, %v42
  %778 = vrot.lane.b32.xlu0 %v770, 32
  %v779 = vpop.permute.xlu0 %778
  %v780 = vsel %vm57, %v779, 0
  %782 = vmatprep.subr.mxu0 0.0
  %783 = vmatpush1.msra.mxu0 0.0
  %784 = vmatprep.subr.mxu0 0.0
  %785 = vmatpush1.msra.mxu0 0.0
  %786 = vmatprep.subr.mxu0 0.0
  %787 = vmatpush1.msra.mxu0 0.0
  %788 = vmatprep.subr.mxu0 0.0
  %789 = vmatpush1.msra.mxu0 0.0
  %790 = vmatprep.subr.mxu0 0.0
  %791 = vmatpush1.msra.mxu0 0.0
  %792 = vmatprep.subr.mxu0 0.0
  %793 = vmatpush1.msra.mxu0 0.0
  %794 = vmatprep.subr.mxu0 0.0
  %795 = vmatpush1.msra.mxu0 0.0
  %796 = vmatprep.subr.mxu0 0.0
  %797 = vmatpush1.msra.mxu0 0.0
  %798 = vmatprep.subr.mxu0 0.0
  %799 = vmatpush1.msra.mxu0 0.0
  %800 = vmatprep.subr.mxu0 0.0
  %801 = vmatpush1.msra.mxu0 0.0
  %802 = vmatprep.subr.mxu0 0.0
  %803 = vmatpush1.msra.mxu0 0.0
  %804 = vmatprep.subr.mxu0 0.0
  %805 = vmatpush1.msra.mxu0 0.0
  %806 = vmatprep.subr.mxu0 0.0
  %807 = vmatpush1.msra.mxu0 %v29
  %808 = vmatprep.subr.mxu0 0.0
  %809 = vmatpush1.msra.mxu0 %v28
  %810 = vmatprep.subr.mxu0 0.0
  %811 = vmatpush1.msra.mxu0 %v27
  %812 = vmatprep.subr.mxu0 0.0
  %813 = vmatpush1.msra.mxu0 %v26
  %814 = vmatprep.subr.mxu0 0.0
  %815 = vmatpush2.msra.mxu0 0.0
  %816 = vmatprep.subr.mxu0 0.0
  %817 = vmatpush2.msra.mxu0 0.0
  %818 = vmatprep.subr.mxu0 0.0
  %819 = vmatpush2.msra.mxu0 0.0
  %820 = vmatprep.subr.mxu0 0.0
  %821 = vmatpush2.msra.mxu0 0.0
  %822 = vmatprep.subr.mxu0 0.0
  %823 = vmatpush2.msra.mxu0 0.0
  %824 = vmatprep.subr.mxu0 0.0
  %825 = vmatpush2.msra.mxu0 0.0
  %826 = vmatprep.subr.mxu0 0.0
  %827 = vmatpush2.msra.mxu0 0.0
  %828 = vmatprep.subr.mxu0 0.0
  %829 = vmatpush2.msra.mxu0 0.0
  %830 = vmatprep.subr.mxu0 0.0
  %831 = vmatpush2.msra.mxu0 0.0
  %832 = vmatprep.subr.mxu0 0.0
  %833 = vmatpush2.msra.mxu0 0.0
  %834 = vmatprep.subr.mxu0 0.0
  %835 = vmatpush2.msra.mxu0 0.0
  %836 = vmatprep.subr.mxu0 0.0
  %837 = vmatpush2.msra.mxu0 0.0
  %838 = vmatprep.subr.mxu0 0.0
  %839 = vmatpush2.msra.mxu0 0.0
  %840 = vmatprep.subr.mxu0 0.0
  %841 = vmatpush2.msra.mxu0 0.0
  %842 = vmatprep.subr.mxu0 0.0
  %843 = vmatpush2.msra.mxu0 0.0
  %844 = vmatprep.subr.mxu0 0.0
  %845 = vmatpush2.msra.mxu0 0.0
  %846 = vmatprep.mubr.f32.mxu0 0.0
  %847 = vmatmul.mubr.f32.gmra.mxu0 %v780
  %v848 = vpop.f32.mrf.mxu0
  %v849 = vadd.f32 0.0, %v848
  %v850 = vpop.f32.mrf.mxu0
  %851 = vdwg.mxu0
  %v852 = vadd.f32 %v776, %v849
  %v853 = vmul.f32 %v852, %v49
  %v854 = vtanh.pop %v853
  %v855 = vmul.f32 %v854, 0.5
  %v856 = vadd.f32 %v855, 0.5
  %v857 = vmul.f32 %v856, %v764
  %859 = vrot.lane.b32.xlu0 %v854, 64
  %v860 = vpop.permute.xlu0 %859
  %v862 = vmul.f32 %v856, %v860
  %864 = vrot.lane.b32.xlu0 %v862, 32
  %v865 = vpop.permute.xlu0 %864
  %v867 = vadd.f32 %v857, %v865
  %v868 = vtanh.pop %v867
  %870 = vrot.lane.b32.xlu0 %v868, 64
  %v871 = vpop.permute.xlu0 %870
  %v873 = vmul.f32 %v856, %v871
  %v874 = vld [vmem:[%s4] sm:$0xff]
  %v875 = vld [vmem:[%s4 + $0x8] sm:$0xff]
  %v876 = vld [vmem:[%s4 + $0x10] sm:$0xff]
  %v877 = vld [vmem:[%s4 + $0x18] sm:$0xff]
  %v878 = vld [vmem:[#allocation2] sm:$0x1]
  %v880 = vlaneseq
  %v881 = vshrl.u32 %v880, 7
  %v882 = vsub.s32 0, %v881
  %v883 = vrot.slane %v878, %v882
  %886 = vrot.lane.b32.xlu0 %v873, 32
  %v887 = vpop.permute.xlu0 %886
  %v888 = vsel %vm57, %v887, 0
  %890 = vmatprep.subr.mxu0 0.0
  %891 = vmatpush1.msra.mxu0 0.0
  %892 = vmatprep.subr.mxu0 0.0
  %893 = vmatpush1.msra.mxu0 0.0
  %894 = vmatprep.subr.mxu0 0.0
  %895 = vmatpush1.msra.mxu0 0.0
  %896 = vmatprep.subr.mxu0 0.0
  %897 = vmatpush1.msra.mxu0 0.0
  %898 = vmatprep.subr.mxu0 0.0
  %899 = vmatpush1.msra.mxu0 0.0
  %900 = vmatprep.subr.mxu0 0.0
  %901 = vmatpush1.msra.mxu0 0.0
  %902 = vmatprep.subr.mxu0 0.0
  %903 = vmatpush1.msra.mxu0 0.0
  %904 = vmatprep.subr.mxu0 0.0
  %905 = vmatpush1.msra.mxu0 0.0
  %906 = vmatprep.subr.mxu0 0.0
  %907 = vmatpush1.msra.mxu0 0.0
  %908 = vmatprep.subr.mxu0 0.0
  %909 = vmatpush1.msra.mxu0 0.0
  %910 = vmatprep.subr.mxu0 0.0
  %911 = vmatpush1.msra.mxu0 0.0
  %912 = vmatprep.subr.mxu0 0.0
  %913 = vmatpush1.msra.mxu0 0.0
  %914 = vmatprep.subr.mxu0 0.0
  %915 = vmatpush1.msra.mxu0 %v877
  %916 = vmatprep.subr.mxu0 0.0
  %917 = vmatpush1.msra.mxu0 %v876
  %918 = vmatprep.subr.mxu0 0.0
  %919 = vmatpush1.msra.mxu0 %v875
  %920 = vmatprep.subr.mxu0 0.0
  %921 = vmatpush1.msra.mxu0 %v874
  %922 = vmatprep.subr.mxu0 0.0
  %923 = vmatpush2.msra.mxu0 0.0
  %924 = vmatprep.subr.mxu0 0.0
  %925 = vmatpush2.msra.mxu0 0.0
  %926 = vmatprep.subr.mxu0 0.0
  %927 = vmatpush2.msra.mxu0 0.0
  %928 = vmatprep.subr.mxu0 0.0
  %929 = vmatpush2.msra.mxu0 0.0
  %930 = vmatprep.subr.mxu0 0.0
  %931 = vmatpush2.msra.mxu0 0.0
  %932 = vmatprep.subr.mxu0 0.0
  %933 = vmatpush2.msra.mxu0 0.0
  %934 = vmatprep.subr.mxu0 0.0
  %935 = vmatpush2.msra.mxu0 0.0
  %936 = vmatprep.subr.mxu0 0.0
  %937 = vmatpush2.msra.mxu0 0.0
  %938 = vmatprep.subr.mxu0 0.0
  %939 = vmatpush2.msra.mxu0 0.0
  %940 = vmatprep.subr.mxu0 0.0
  %941 = vmatpush2.msra.mxu0 0.0
  %942 = vmatprep.subr.mxu0 0.0
  %943 = vmatpush2.msra.mxu0 0.0
  %944 = vmatprep.subr.mxu0 0.0
  %945 = vmatpush2.msra.mxu0 0.0
  %946 = vmatprep.subr.mxu0 0.0
  %947 = vmatpush2.msra.mxu0 0.0
  %948 = vmatprep.subr.mxu0 0.0
  %949 = vmatpush2.msra.mxu0 0.0
  %950 = vmatprep.subr.mxu0 0.0
  %951 = vmatpush2.msra.mxu0 0.0
  %952 = vmatprep.subr.mxu0 0.0
  %953 = vmatpush2.msra.mxu0 0.0
  %954 = vmatprep.mubr.f32.mxu0 0.0
  %955 = vmatmul.mubr.f32.gmra.mxu0 %v888
  %v956 = vpop.f32.mrf.mxu0
  %v957 = vadd.f32 %v883, %v956
  %v958 = vpop.f32.mrf.mxu0
  %959 = vdwg.mxu0
  %vm960 = vcmask 7168
  %961 = vst.msk [vmem:[%s6] sm:$0xff] %vm960, %v957
  // Predicated region
  $region26: #{simple_lstm_forward.1} parent=0 // pred_check
    _
  $region27: #{simple_lstm_forward.1} parent=0 // pred_check_branch
    %963 = sbr.rel (0) target = $region29
  $region28: #{simple_lstm_forward.1} parent=0 // pred_region
    _
  $region29: #{simple_lstm_forward.1} parent=0 // pred_fallthru
    _
  // Predicated region
  $region30: #{simple_lstm_forward.1} parent=0 // pred_check
    _
  $region31: #{simple_lstm_forward.1} parent=0 // pred_check_branch
    %965 = sbr.rel (0) target = $region33
  $region32: #{simple_lstm_forward.1} parent=0 // pred_region
    _
  $region33: #{simple_lstm_forward.1} parent=0 // pred_fallthru
    _

</llo_original>
